<compile_context>
chip_gen: v6e
topology: v6e:2x2x1
jax: 0.10.0
libtpu: 0.0.40
codegen_flags: <defaults>
</compile_context>

<pallas_src>
import functools

import jax
import jax.numpy as jnp
from jax.experimental import pallas as pl
from jax.experimental.pallas import tpu as pltpu


def _mlp_kernel(xT_ref,
                w1_ref, w2_ref, w3_ref, w4_ref,
                b_ref,
                o_ref,
                *, H1, H2, H3, D_out):
    # Static sublane slices of the packed bias slab (offsets are 8-multiples).
    o1 = H1
    o2 = H1 + H2
    o3 = H1 + H2 + H3
    b1 = b_ref[0:o1, :]            # (H1, 1)
    b2 = b_ref[o1:o2, :]           # (H2, 1)
    b3 = b_ref[o2:o3, :]           # (H3, 1)
    b4 = b_ref[o3:o3 + D_out, :]   # (D_out, 1)

    # Batch on lanes: (D_in, tile_b).  All compute in f32.
    xT = xT_ref[...].astype(jnp.float32)

    h = jnp.dot(w1_ref[...], xT, preferred_element_type=jnp.float32) + b1
    h = jax.lax.logistic(h)                    # (H1, tile_b)  lane-dense EUP sigmoid

    h = jnp.dot(w2_ref[...], h, preferred_element_type=jnp.float32) + b2
    h = jnp.tanh(h)                            # (H2, tile_b)

    h = jnp.dot(w3_ref[...], h, preferred_element_type=jnp.float32) + b3
    h = jax.lax.logistic(h)                    # (H3, tile_b)

    out = jnp.dot(w4_ref[...], h, preferred_element_type=jnp.float32) + b4
    o_ref[...] = out.astype(o_ref.dtype)       # (D_out, tile_b) unmasked lane-dense store


def _tensorcores_per_chip():
    """2 TensorCores per chip on megacore parts (v4/v7x); 1 on v5e/v6e."""
    try:
        kind = jax.devices()[0].device_kind.lower()
    except Exception:
        return 1
    return 2 if ("v7" in kind or "v4" in kind) else 1


def _choose_tile_b(B, n_cores, cap=2048):
    """Batch is the lane axis inside the kernel, so tiles must be 128-aligned
    unless a single tile covers the whole batch.  Single-TC chips get one grid
    step (no per-step overhead); megacore chips get >= n_cores steps."""
    if B <= 128:
        return B
    if n_cores <= 1 and B <= cap:
        return B
    n_steps = max(n_cores, pl.cdiv(B, cap))
    return ((pl.cdiv(B, n_steps) + 127) // 128) * 128


@functools.partial(jax.jit, static_argnames=("tile_b",))
def _mlp_forward_impl(x, params, *, tile_b):
    B, D_in = x.shape
    H1 = params["w1"].shape[0]
    H2 = params["w2"].shape[0]
    H3 = params["w3"].shape[0]
    D_out = params["w4"].shape[0]

    # Wrapper-side layout plumbing: batch onto the lane axis.
    xT = x.T                                                   # (D_in, B)
    b_all = jnp.concatenate(
        [params["b1"], params["b2"], params["b3"], params["b4"]], axis=0
    )                                                          # (H1+H2+H3+D_out, 1)

    n_tiles = pl.cdiv(B, tile_b)

    # Weights/biases are tiny: replicate full tensors to every grid step
    # (constant index_map -> stay resident, no re-DMA across steps).
    def full_spec(shape):
        return pl.BlockSpec(shape, lambda i: (0,) * len(shape))

    grid_spec = pltpu.PrefetchScalarGridSpec(
        num_scalar_prefetch=0,
        grid=(n_tiles,),
        in_specs=[
            pl.BlockSpec((D_in, tile_b), lambda i: (0, i)),    # x^T tile
            full_spec((H1, D_in)),
            full_spec((H2, H1)),
            full_spec((H3, H2)),
            full_spec((D_out, H3)),
            full_spec((H1 + H2 + H3 + D_out, 1)),              # packed biases
        ],
        out_specs=pl.BlockSpec((D_out, tile_b), lambda i: (0, i)),
    )

    flops = 2 * B * (D_in * H1 + H1 * H2 + H2 * H3 + H3 * D_out)
    transcendentals = B * (H1 + H2 + H3)
    weight_bytes = 4 * (D_in * H1 + H1 * H2 + H2 * H3 + H3 * D_out
                        + H1 + H2 + H3 + D_out)
    bytes_accessed = 4 * B * (D_in + D_out) + weight_bytes

    kernel = functools.partial(_mlp_kernel, H1=H1, H2=H2, H3=H3, D_out=D_out)

    outT = pl.pallas_call(
        kernel,
        out_shape=jax.ShapeDtypeStruct((D_out, B), x.dtype),
        grid_spec=grid_spec,
        compiler_params=pltpu.CompilerParams(
            dimension_semantics=("parallel",)),
        cost_estimate=pl.CostEstimate(
            flops=flops,
            transcendentals=transcendentals,
            bytes_accessed=bytes_accessed),
    )(xT, params["w1"], params["w2"], params["w3"], params["w4"], b_all)

    return outT.T                                              # (B, D_out)


def mlp_forward(x, params, tile_b=None):
    """x: (B, D_in); params: torch-native weights w1..w4 (out, in), biases b1..b4 (out, 1)."""
    B = x.shape[0]
    if tile_b is None:
        tile_b = _choose_tile_b(B, _tensorcores_per_chip())
    else:
        # Sanitize user tiles: lane-axis tiles must be 128-aligned unless one
        # tile covers the whole batch.
        tile_b = ((int(tile_b) + 127) // 128) * 128
        if tile_b >= B:
            tile_b = B
    return _mlp_forward_impl(x, params, tile_b=tile_b)


def init_params(key, d_in, h1, h2, h3, d_out):
    """Mimics torch.nn.Linear default init U(-1/sqrt(fan_in), 1/sqrt(fan_in)).
    Weights stored torch-native as (out, in); biases as (out, 1)."""
    dims = [(d_in, h1), (h1, h2), (h2, h3), (h3, d_out)]
    params = {}
    keys = jax.random.split(key, 2 * len(dims))
    for idx, (fan_in, fan_out) in enumerate(dims):
        bound = 1.0 / float(fan_in) ** 0.5
        wk, bk = keys[2 * idx], keys[2 * idx + 1]
        params[f"w{idx + 1}"] = jax.random.uniform(
            wk, (fan_out, fan_in), jnp.float32, -bound, bound)
        params[f"b{idx + 1}"] = jax.random.uniform(
            bk, (fan_out, 1), jnp.float32, -bound, bound)
    return params


def mlp_reference(x, params):
    h = jax.nn.sigmoid(x @ params["w1"].T + params["b1"][:, 0])
    h = jnp.tanh(h @ params["w2"].T + params["b2"][:, 0])
    h = jax.nn.sigmoid(h @ params["w3"].T + params["b3"][:, 0])
    return h @ params["w4"].T + params["b4"][:, 0]


if __name__ == "__main__":
    # params = {'FEATURE_DIM': 16, 'HIDDEN_1': 32, 'HIDDEN_2': 64,
    #           'HIDDEN_3': 32, 'OUTPUT_DIM': 8}
    B, D_in, H1, H2, H3, D_out = 256, 16, 32, 64, 32, 8

    key = jax.random.PRNGKey(0)
    pkey, xkey = jax.random.split(key)
    params = init_params(pkey, D_in, H1, H2, H3, D_out)
    x = jax.random.normal(xkey, (B, D_in), jnp.float32)

    # Default tiles: 1 step on v5e/v6e (tile_b=256), 2 parallel 128-wide steps on v7x.
    out = jax.block_until_ready(mlp_forward(x, params))
    ref = mlp_reference(x, params)
    assert out.shape == (B, D_out)
    assert jnp.allclose(out, ref, atol=1e-5, rtol=1e-5)

    # Ragged batch: user tile is sanitized up to a single full-batch block.
    x_odd = x[:100]
    out_odd = jax.block_until_ready(mlp_forward(x_odd, params, tile_b=64))
    assert out_odd.shape == (100, D_out)
    assert jnp.allclose(out_odd, mlp_reference(x_odd, params), atol=1e-5, rtol=1e-5)

    # Partial trailing block: B=300 with forced 128-wide tiles (masked writeback,
    # no wrapper-side padding; padded lanes never contaminate real columns).
    x3 = jax.random.normal(jax.random.PRNGKey(1), (300, D_in), jnp.float32)
    out3 = jax.block_until_ready(mlp_forward(x3, params, tile_b=128))
    assert out3.shape == (300, D_out)
    assert jnp.allclose(out3, mlp_reference(x3, params), atol=1e-5, rtol=1e-5)

    print("KERNEL_OK")
</pallas_src>

<mosaic_0001>
module attributes {stable_mosaic.version = 11 : i64} {
  func.func @_mlp_kernel(%arg0: i32, %arg1: memref<16x256xf32, #tpu.memory_space<vmem>>, %arg2: memref<32x16xf32, #tpu.memory_space<vmem>>, %arg3: memref<64x32xf32, #tpu.memory_space<vmem>>, %arg4: memref<32x64xf32, #tpu.memory_space<vmem>>, %arg5: memref<8x32xf32, #tpu.memory_space<vmem>>, %arg6: memref<136x1xf32, #tpu.memory_space<vmem>>, %arg7: memref<8x256xf32, #tpu.memory_space<vmem>>) attributes {dimension_semantics = [#tpu.dimension_semantics<parallel>], iteration_bounds = array<i64: 1>, scalar_prefetch = 0 : i64, scratch_operands = 0 : i64, tpu.core_type = #tpu.core_type<tc>, window_params = [{transform_indices = @transform_0, window_bounds = array<i64: 16, 256>}, {pipeline_mode = #tpu.pipeline_mode<synchronous>, transform_indices = @transform_1, window_bounds = array<i64: 32, 16>}, {pipeline_mode = #tpu.pipeline_mode<synchronous>, transform_indices = @transform_2, window_bounds = array<i64: 64, 32>}, {pipeline_mode = #tpu.pipeline_mode<synchronous>, transform_indices = @transform_3, window_bounds = array<i64: 32, 64>}, {pipeline_mode = #tpu.pipeline_mode<synchronous>, transform_indices = @transform_4, window_bounds = array<i64: 8, 32>}, {pipeline_mode = #tpu.pipeline_mode<synchronous>, transform_indices = @transform_5, window_bounds = array<i64: 136, 1>}, {transform_indices = @transform_6, window_bounds = array<i64: 8, 256>}]} {
    %c0 = arith.constant 0 : index
    %c0_0 = arith.constant 0 : index
    %0 = vector.load %arg6[%c0, %c0_0] : memref<136x1xf32, #tpu.memory_space<vmem>>, vector<32x1xf32>
    %c32 = arith.constant 32 : index
    %c0_1 = arith.constant 0 : index
    %1 = vector.load %arg6[%c32, %c0_1] : memref<136x1xf32, #tpu.memory_space<vmem>>, vector<64x1xf32>
    %c96 = arith.constant 96 : index
    %c0_2 = arith.constant 0 : index
    %2 = vector.load %arg6[%c96, %c0_2] : memref<136x1xf32, #tpu.memory_space<vmem>>, vector<32x1xf32>
    %c128 = arith.constant 128 : index
    %c0_3 = arith.constant 0 : index
    %3 = vector.load %arg6[%c128, %c0_3] : memref<136x1xf32, #tpu.memory_space<vmem>>, vector<8x1xf32>
    %c0_4 = arith.constant 0 : index
    %c0_5 = arith.constant 0 : index
    %4 = vector.load %arg1[%c0_4, %c0_5] : memref<16x256xf32, #tpu.memory_space<vmem>>, vector<16x256xf32>
    %c0_6 = arith.constant 0 : index
    %c0_7 = arith.constant 0 : index
    %5 = vector.load %arg2[%c0_6, %c0_7] : memref<32x16xf32, #tpu.memory_space<vmem>>, vector<32x16xf32>
    %cst = arith.constant dense<0.000000e+00> : vector<32x256xf32>
    %6 = tpu.matmul %5, %4, %cst {dimension_numbers = #tpu.dot_dimension_numbers<[1], [0], [0], [1], [0, 0, 1, 1], [], []>} : vector<32x16xf32>, vector<16x256xf32>, vector<32x256xf32> -> vector<32x256xf32>
    %7 = vector.broadcast %0 : vector<32x1xf32> to vector<32x256xf32>
    %8 = arith.addf %6, %7 : vector<32x256xf32>
    %9 = arith.negf %8 : vector<32x256xf32>
    %10 = math.exp %9 : vector<32x256xf32>
    %cst_8 = arith.constant 1.000000e+00 : f32
    %11 = vector.broadcast %cst_8 : f32 to vector<32x256xf32>
    %12 = arith.addf %11, %10 : vector<32x256xf32>
    %13 = arith.divf %11, %12 : vector<32x256xf32>
    %c0_9 = arith.constant 0 : index
    %c0_10 = arith.constant 0 : index
    %14 = vector.load %arg3[%c0_9, %c0_10] : memref<64x32xf32, #tpu.memory_space<vmem>>, vector<64x32xf32>
    %cst_11 = arith.constant dense<0.000000e+00> : vector<64x256xf32>
    %15 = tpu.matmul %14, %13, %cst_11 {dimension_numbers = #tpu.dot_dimension_numbers<[1], [0], [0], [1], [0, 0, 1, 1], [], []>} : vector<64x32xf32>, vector<32x256xf32>, vector<64x256xf32> -> vector<64x256xf32>
    %16 = vector.broadcast %1 : vector<64x1xf32> to vector<64x256xf32>
    %17 = arith.addf %15, %16 : vector<64x256xf32>
    %18 = math.tanh %17 : vector<64x256xf32>
    %c0_12 = arith.constant 0 : index
    %c0_13 = arith.constant 0 : index
    %19 = vector.load %arg4[%c0_12, %c0_13] : memref<32x64xf32, #tpu.memory_space<vmem>>, vector<32x64xf32>
    %cst_14 = arith.constant dense<0.000000e+00> : vector<32x256xf32>
    %20 = tpu.matmul %19, %18, %cst_14 {dimension_numbers = #tpu.dot_dimension_numbers<[1], [0], [0], [1], [0, 0, 1, 1], [], []>} : vector<32x64xf32>, vector<64x256xf32>, vector<32x256xf32> -> vector<32x256xf32>
    %21 = vector.broadcast %2 : vector<32x1xf32> to vector<32x256xf32>
    %22 = arith.addf %20, %21 : vector<32x256xf32>
    %23 = arith.negf %22 : vector<32x256xf32>
    %24 = math.exp %23 : vector<32x256xf32>
    %cst_15 = arith.constant 1.000000e+00 : f32
    %25 = vector.broadcast %cst_15 : f32 to vector<32x256xf32>
    %26 = arith.addf %25, %24 : vector<32x256xf32>
    %27 = arith.divf %25, %26 : vector<32x256xf32>
    %c0_16 = arith.constant 0 : index
    %c0_17 = arith.constant 0 : index
    %28 = vector.load %arg5[%c0_16, %c0_17] : memref<8x32xf32, #tpu.memory_space<vmem>>, vector<8x32xf32>
    %cst_18 = arith.constant dense<0.000000e+00> : vector<8x256xf32>
    %29 = tpu.matmul %28, %27, %cst_18 {dimension_numbers = #tpu.dot_dimension_numbers<[1], [0], [0], [1], [0, 0, 1, 1], [], []>} : vector<8x32xf32>, vector<32x256xf32>, vector<8x256xf32> -> vector<8x256xf32>
    %30 = vector.broadcast %3 : vector<8x1xf32> to vector<8x256xf32>
    %31 = arith.addf %29, %30 : vector<8x256xf32>
    %c0_19 = arith.constant 0 : index
    %c0_20 = arith.constant 0 : index
    %32 = vector.load %arg7[%c0_19, %c0_20] : memref<8x256xf32, #tpu.memory_space<vmem>>, vector<8x256xf32>
    tpu.vector_store %arg7[%c0_19, %c0_20], %31 {strides = array<i32>} : memref<8x256xf32, #tpu.memory_space<vmem>>, vector<8x256xf32>,
    return
  }
  func.func @transform_0(%arg0: i32) -> (i32, i32) {
    %c0_i32 = arith.constant 0 : i32
    %c0_i32_0 = arith.constant 0 : i32
    return %c0_i32, %arg0 : i32, i32
  }
  func.func @transform_1(%arg0: i32) -> (i32, i32) {
    %c0_i32 = arith.constant 0 : i32
    %c0_i32_0 = arith.constant 0 : i32
    %c0_i32_1 = arith.constant 0 : i32
    return %c0_i32, %c0_i32_0 : i32, i32
  }
  func.func @transform_2(%arg0: i32) -> (i32, i32) {
    %c0_i32 = arith.constant 0 : i32
    %c0_i32_0 = arith.constant 0 : i32
    %c0_i32_1 = arith.constant 0 : i32
    return %c0_i32, %c0_i32_0 : i32, i32
  }
  func.func @transform_3(%arg0: i32) -> (i32, i32) {
    %c0_i32 = arith.constant 0 : i32
    %c0_i32_0 = arith.constant 0 : i32
    %c0_i32_1 = arith.constant 0 : i32
    return %c0_i32, %c0_i32_0 : i32, i32
  }
  func.func @transform_4(%arg0: i32) -> (i32, i32) {
    %c0_i32 = arith.constant 0 : i32
    %c0_i32_0 = arith.constant 0 : i32
    %c0_i32_1 = arith.constant 0 : i32
    return %c0_i32, %c0_i32_0 : i32, i32
  }
  func.func @transform_5(%arg0: i32) -> (i32, i32) {
    %c0_i32 = arith.constant 0 : i32
    %c0_i32_0 = arith.constant 0 : i32
    %c0_i32_1 = arith.constant 0 : i32
    return %c0_i32, %c0_i32_0 : i32, i32
  }
  func.func @transform_6(%arg0: i32) -> (i32, i32) {
    %c0_i32 = arith.constant 0 : i32
    %c0_i32_0 = arith.constant 0 : i32
    return %c0_i32, %arg0 : i32, i32
  }
}

</mosaic_0001>

<llo_original>
// kernel: _mlp_forward_impl.1
$region0: #{_mlp_forward_impl.1}
  #allocation0 [shape = 'u32[]', space=smem, size = 0x4, offset = 0x4, fixed_abs, tag = 'smem constant byte address 0x4 - core index']
  #allocation1 [shape = 'u32[144,128]{1,0:T(1,128)}', space=vmem, size = 0x12000, scoped, tag = 'internal scratch']
  %s0 = inlined_call_operand.vmem [shape: f32[16,256], index: 0, kind: input, shape index: {}]
  %s1 = inlined_call_operand.vmem [shape: f32[32,16], index: 1, kind: input, shape index: {}]
  %s2 = inlined_call_operand.vmem [shape: f32[64,32], index: 2, kind: input, shape index: {}]
  %s3 = inlined_call_operand.vmem [shape: f32[32,64], index: 3, kind: input, shape index: {}]
  %s4 = inlined_call_operand.vmem [shape: f32[8,32], index: 4, kind: input, shape index: {}]
  %s5 = inlined_call_operand.vmem [shape: f32[136,1], index: 5, kind: input, shape index: {}]
  %s6 = inlined_call_operand.hbm [shape: f32[8,256], index: 6, kind: output, shape index: {}]
  %s7 = sld [smem:[#allocation0]]
  $region34: #{_mlp_forward_impl.1} parent=0
    _
  %s9 = ssub.s32 1, %s7
  %s10 = scalar_select 0, %s9, %s7
  $region1: #{_mlp_forward_impl.1} parent=0
    #allocation2 [shape = 'u8[8192]{0}', space=vmem, size = 0x2000, scoped, tag = 'output window, operand 0, single buffered']
    #allocation3 [shape = 's32[1]{0}', space=sflag, size = 0x4, scoped, tag = 'scoped memory for _mlp_forward_impl.1']
    %11 = vsyncpa [#allocation3], 0
    // Predicated region
    $region2: #{_mlp_forward_impl.1} parent=1 // pred_check
      _
    $region3: #{_mlp_forward_impl.1} parent=1 // pred_check_branch
      %13 = sbr.rel (0) target = $region5
    $region4: #{_mlp_forward_impl.1} parent=1 // pred_region
      _
    $region5: #{_mlp_forward_impl.1} parent=1 // pred_fallthru
      _
    // Predicated region
    $region6: #{_mlp_forward_impl.1} parent=1 // pred_check
      _
    $region7: #{_mlp_forward_impl.1} parent=1 // pred_check_branch
      %15 = sbr.rel (0) target = $region9
    $region8: #{_mlp_forward_impl.1} parent=1 // pred_region
      _
    $region9: #{_mlp_forward_impl.1} parent=1 // pred_fallthru
      _
    // Predicated region
    $region10: #{_mlp_forward_impl.1} parent=1 // pred_check
      _
    $region11: #{_mlp_forward_impl.1} parent=1 // pred_check_branch
      %17 = sbr.rel (0) target = $region13
    $region12: #{_mlp_forward_impl.1} parent=1 // pred_region
      _
    $region13: #{_mlp_forward_impl.1} parent=1 // pred_fallthru
      _
    // Predicated region
    $region14: #{_mlp_forward_impl.1} parent=1 // pred_check
      _
    $region15: #{_mlp_forward_impl.1} parent=1 // pred_check_branch
      %19 = sbr.rel (0) target = $region17
    $region16: #{_mlp_forward_impl.1} parent=1 // pred_region
      _
    $region17: #{_mlp_forward_impl.1} parent=1 // pred_fallthru
      _
    // Predicated region
    $region18: #{_mlp_forward_impl.1} parent=1 // pred_check
      _
    $region19: #{_mlp_forward_impl.1} parent=1 // pred_check_branch
      %21 = sbr.rel (0) target = $region21
    $region20: #{_mlp_forward_impl.1} parent=1 // pred_region
      _
    $region21: #{_mlp_forward_impl.1} parent=1 // pred_fallthru
      _
    // Predicated region
    $region22: #{_mlp_forward_impl.1} parent=1 // pred_check
      _
    $region23: #{_mlp_forward_impl.1} parent=1 // pred_check_branch
      %23 = sbr.rel (0) target = $region25
    $region24: #{_mlp_forward_impl.1} parent=1 // pred_region
      _
    $region25: #{_mlp_forward_impl.1} parent=1 // pred_fallthru
      _
    %v24 = vld [vmem:[%s5] sm:$0xff]
    %v25 = vld [vmem:[%s5 + $0x8] sm:$0xff]
    %v26 = vld [vmem:[%s5 + $0x10] sm:$0xff]
    %v27 = vld [vmem:[%s5 + $0x18] sm:$0xff]
    %v28 = vld [vmem:[%s5 + $0x20] sm:$0xff]
    %v29 = vld [vmem:[%s5 + $0x28] sm:$0xff]
    %v30 = vld [vmem:[%s5 + $0x30] sm:$0xff]
    %v31 = vld [vmem:[%s5 + $0x38] sm:$0xff]
    %v32 = vld [vmem:[%s5 + $0x40] sm:$0xff]
    %v33 = vld [vmem:[%s5 + $0x48] sm:$0xff]
    %v34 = vld [vmem:[%s5 + $0x50] sm:$0xff]
    %v35 = vld [vmem:[%s5 + $0x58] sm:$0xff]
    %v36 = vld [vmem:[%s5 + $0x60] sm:$0xff]
    %v37 = vld [vmem:[%s5 + $0x68] sm:$0xff]
    %v38 = vld [vmem:[%s5 + $0x70] sm:$0xff]
    %v39 = vld [vmem:[%s5 + $0x78] sm:$0xff]
    %v40 = vld [vmem:[%s5 + $0x80] sm:$0xff]
    %v41 = vld [vmem:[%s0] sm:$0xff]
    %v42 = vld [vmem:[%s0 + $0x8] sm:$0xff]
    %v43 = vld [vmem:[%s0 + $0x10] sm:$0xff]
    %v44 = vld [vmem:[%s0 + $0x18] sm:$0xff]
    %v45 = vld [vmem:[%s1] sm:$0xff]
    %v46 = vld [vmem:[%s1 + $0x8] sm:$0xff]
    %v47 = vld [vmem:[%s1 + $0x10] sm:$0xff]
    %v48 = vld [vmem:[%s1 + $0x18] sm:$0xff]
    %50 = vset.pattern.permute.xlu0 0
    %51 = vperm.xlu0 %50, %v24
    %v52 = vpop.permute.xlu0 %51
    %55 = vset.pattern.permute.xlu0 0
    %56 = vperm.xlu0 %55, %v25
    %v57 = vpop.permute.xlu0 %56
    %60 = vset.pattern.permute.xlu0 0
    %61 = vperm.xlu0 %60, %v26
    %v62 = vpop.permute.xlu0 %61
    %65 = vset.pattern.permute.xlu0 0
    %66 = vperm.xlu0 %65, %v27
    %v67 = vpop.permute.xlu0 %66
    %vm69 = vcmask 130048
    %v71 = vsel %vm69, %v45, 0
    %v74 = vsel %vm69, %v46, 0
    %v77 = vsel %vm69, %v47, 0
    %v80 = vsel %vm69, %v48, 0
    %82 = vmatprep.subr.mxu0 0.0
    %83 = vmatpush1.msra.mxu0 0.0
    %84 = vmatprep.subr.mxu0 0.0
    %85 = vmatpush1.msra.mxu0 0.0
    %86 = vmatprep.subr.mxu0 0.0
    %87 = vmatpush1.msra.mxu0 0.0
    %88 = vmatprep.subr.mxu0 0.0
    %89 = vmatpush1.msra.mxu0 0.0
    %90 = vmatprep.subr.mxu0 0.0
    %91 = vmatpush1.msra.mxu0 0.0
    %92 = vmatprep.subr.mxu0 0.0
    %93 = vmatpush1.msra.mxu0 0.0
    %94 = vmatprep.subr.mxu0 0.0
    %95 = vmatpush1.msra.mxu0 0.0
    %96 = vmatprep.subr.mxu0 0.0
    %97 = vmatpush1.msra.mxu0 0.0
    %98 = vmatprep.subr.mxu0 0.0
    %99 = vmatpush1.msra.mxu0 0.0
    %100 = vmatprep.subr.mxu0 0.0
    %101 = vmatpush1.msra.mxu0 0.0
    %102 = vmatprep.subr.mxu0 0.0
    %103 = vmatpush1.msra.mxu0 0.0
    %104 = vmatprep.subr.mxu0 0.0
    %105 = vmatpush1.msra.mxu0 0.0
    %106 = vmatprep.subr.mxu0 0.0
    %107 = vmatpush1.msra.mxu0 0.0
    %108 = vmatprep.subr.mxu0 0.0
    %109 = vmatpush1.msra.mxu0 0.0
    %110 = vmatprep.subr.mxu0 %v44
    %111 = vmatpush1.msra.mxu0 %v43
    %112 = vmatprep.subr.mxu0 %v42
    %113 = vmatpush1.msra.mxu0 %v41
    %114 = vmatprep.subr.mxu0 0.0
    %115 = vmatpush2.msra.mxu0 0.0
    %116 = vmatprep.subr.mxu0 0.0
    %117 = vmatpush2.msra.mxu0 0.0
    %118 = vmatprep.subr.mxu0 0.0
    %119 = vmatpush2.msra.mxu0 0.0
    %120 = vmatprep.subr.mxu0 0.0
    %121 = vmatpush2.msra.mxu0 0.0
    %122 = vmatprep.subr.mxu0 0.0
    %123 = vmatpush2.msra.mxu0 0.0
    %124 = vmatprep.subr.mxu0 0.0
    %125 = vmatpush2.msra.mxu0 0.0
    %126 = vmatprep.subr.mxu0 0.0
    %127 = vmatpush2.msra.mxu0 0.0
    %128 = vmatprep.subr.mxu0 0.0
    %129 = vmatpush2.msra.mxu0 0.0
    %130 = vmatprep.subr.mxu0 0.0
    %131 = vmatpush2.msra.mxu0 0.0
    %132 = vmatprep.subr.mxu0 0.0
    %133 = vmatpush2.msra.mxu0 0.0
    %134 = vmatprep.subr.mxu0 0.0
    %135 = vmatpush2.msra.mxu0 0.0
    %136 = vmatprep.subr.mxu0 0.0
    %137 = vmatpush2.msra.mxu0 0.0
    %138 = vmatprep.subr.mxu0 0.0
    %139 = vmatpush2.msra.mxu0 0.0
    %140 = vmatprep.subr.mxu0 0.0
    %141 = vmatpush2.msra.mxu0 0.0
    %142 = vmatprep.subr.mxu0 0.0
    %143 = vmatpush2.msra.mxu0 0.0
    %144 = vmatprep.subr.mxu0 0.0
    %145 = vmatpush2.msra.mxu0 0.0
    %146 = vmatprep.mubr.f32.mxu0 0.0
    %147 = vmatmul.mubr.f32.gmra.mxu0 %v71
    %v148 = vpop.f32.mrf.mxu0
    %v149 = vadd.f32 %v52, %v148
    %v150 = vpop.f32.mrf.mxu0
    %v151 = vadd.f32 %v52, %v150
    %152 = vmatprep.mubr.f32.mxu0 0.0
    %153 = vmatmul.mubr.f32.gmra.mxu0 %v74
    %v154 = vpop.f32.mrf.mxu0
    %v155 = vadd.f32 %v57, %v154
    %v156 = vpop.f32.mrf.mxu0
    %v157 = vadd.f32 %v57, %v156
    %158 = vmatprep.mubr.f32.mxu0 0.0
    %159 = vmatmul.mubr.f32.gmra.mxu0 %v77
    %v160 = vpop.f32.mrf.mxu0
    %v161 = vadd.f32 %v62, %v160
    %v162 = vpop.f32.mrf.mxu0
    %v163 = vadd.f32 %v62, %v162
    %164 = vmatprep.mubr.f32.mxu0 0.0
    %165 = vmatmul.mubr.f32.gmra.mxu0 %v80
    %v166 = vpop.f32.mrf.mxu0
    %v167 = vadd.f32 %v67, %v166
    %v168 = vpop.f32.mrf.mxu0
    %v169 = vadd.f32 %v67, %v168
    %170 = vdwg.mxu0
    %v171 = vxor.u32 %v149, 2147483648
    %v172 = vxor.u32 %v151, 2147483648
    %v173 = vxor.u32 %v155, 2147483648
    %v174 = vxor.u32 %v157, 2147483648
    %v175 = vxor.u32 %v161, 2147483648
    %v176 = vxor.u32 %v163, 2147483648
    %v177 = vxor.u32 %v167, 2147483648
    %v178 = vxor.u32 %v169, 2147483648
    %v179 = vmul.f32 %v171, 1.442695
    %v180 = vpow.pop %v179
    %v181 = vmul.f32 %v172, 1.442695
    %v182 = vpow.pop %v181
    %v183 = vmul.f32 %v173, 1.442695
    %v184 = vpow.pop %v183
    %v185 = vmul.f32 %v174, 1.442695
    %v186 = vpow.pop %v185
    %v187 = vmul.f32 %v175, 1.442695
    %v188 = vpow.pop %v187
    %v189 = vmul.f32 %v176, 1.442695
    %v190 = vpow.pop %v189
    %v191 = vmul.f32 %v177, 1.442695
    %v192 = vpow.pop %v191
    %v193 = vmul.f32 %v178, 1.442695
    %v194 = vpow.pop %v193
    %v195 = vadd.f32 %v180, 1.0
    %v196 = vadd.f32 %v182, 1.0
    %v197 = vadd.f32 %v184, 1.0
    %v198 = vadd.f32 %v186, 1.0
    %v199 = vadd.f32 %v188, 1.0
    %v200 = vadd.f32 %v190, 1.0
    %v201 = vadd.f32 %v192, 1.0
    %v202 = vadd.f32 %v194, 1.0
    %v203 = vrcp.pop %v195
    %v204 = vmul.f32 1.0, %v203
    %v205 = vrcp.pop %v196
    %v206 = vmul.f32 1.0, %v205
    %v207 = vrcp.pop %v197
    %v208 = vmul.f32 1.0, %v207
    %v209 = vrcp.pop %v198
    %v210 = vmul.f32 1.0, %v209
    %v211 = vrcp.pop %v199
    %v212 = vmul.f32 1.0, %v211
    %v213 = vrcp.pop %v200
    %v214 = vmul.f32 1.0, %v213
    %v215 = vrcp.pop %v201
    %v216 = vmul.f32 1.0, %v215
    %v217 = vrcp.pop %v202
    %v218 = vmul.f32 1.0, %v217
    %v219 = vld [vmem:[%s2] sm:$0xff]
    %v220 = vld [vmem:[%s2 + $0x8] sm:$0xff]
    %v221 = vld [vmem:[%s2 + $0x10] sm:$0xff]
    %v222 = vld [vmem:[%s2 + $0x18] sm:$0xff]
    %v223 = vld [vmem:[%s2 + $0x20] sm:$0xff]
    %v224 = vld [vmem:[%s2 + $0x28] sm:$0xff]
    %v225 = vld [vmem:[%s2 + $0x30] sm:$0xff]
    %v226 = vld [vmem:[%s2 + $0x38] sm:$0xff]
    %228 = vset.pattern.permute.xlu0 0
    %229 = vperm.xlu0 %228, %v28
    %v230 = vpop.permute.xlu0 %229
    %233 = vset.pattern.permute.xlu0 0
    %234 = vperm.xlu0 %233, %v29
    %v235 = vpop.permute.xlu0 %234
    %238 = vset.pattern.permute.xlu0 0
    %239 = vperm.xlu0 %238, %v30
    %v240 = vpop.permute.xlu0 %239
    %243 = vset.pattern.permute.xlu0 0
    %244 = vperm.xlu0 %243, %v31
    %v245 = vpop.permute.xlu0 %244
    %248 = vset.pattern.permute.xlu0 0
    %249 = vperm.xlu0 %248, %v32
    %v250 = vpop.permute.xlu0 %249
    %253 = vset.pattern.permute.xlu0 0
    %254 = vperm.xlu0 %253, %v33
    %v255 = vpop.permute.xlu0 %254
    %258 = vset.pattern.permute.xlu0 0
    %259 = vperm.xlu0 %258, %v34
    %v260 = vpop.permute.xlu0 %259
    %263 = vset.pattern.permute.xlu0 0
    %264 = vperm.xlu0 %263, %v35
    %v265 = vpop.permute.xlu0 %264
    %vm267 = vcmask 261120
    %v269 = vsel %vm267, %v219, 0
    %v272 = vsel %vm267, %v220, 0
    %v275 = vsel %vm267, %v221, 0
    %v278 = vsel %vm267, %v222, 0
    %v281 = vsel %vm267, %v223, 0
    %v284 = vsel %vm267, %v224, 0
    %v287 = vsel %vm267, %v225, 0
    %v290 = vsel %vm267, %v226, 0
    %292 = vmatprep.subr.mxu0 0.0
    %293 = vmatpush1.msra.mxu0 0.0
    %294 = vmatprep.subr.mxu0 0.0
    %295 = vmatpush1.msra.mxu0 0.0
    %296 = vmatprep.subr.mxu0 0.0
    %297 = vmatpush1.msra.mxu0 0.0
    %298 = vmatprep.subr.mxu0 0.0
    %299 = vmatpush1.msra.mxu0 0.0
    %300 = vmatprep.subr.mxu0 0.0
    %301 = vmatpush1.msra.mxu0 0.0
    %302 = vmatprep.subr.mxu0 0.0
    %303 = vmatpush1.msra.mxu0 0.0
    %304 = vmatprep.subr.mxu0 0.0
    %305 = vmatpush1.msra.mxu0 0.0
    %306 = vmatprep.subr.mxu0 0.0
    %307 = vmatpush1.msra.mxu0 0.0
    %308 = vmatprep.subr.mxu0 0.0
    %309 = vmatpush1.msra.mxu0 0.0
    %310 = vmatprep.subr.mxu0 0.0
    %311 = vmatpush1.msra.mxu0 0.0
    %312 = vmatprep.subr.mxu0 0.0
    %313 = vmatpush1.msra.mxu0 0.0
    %314 = vmatprep.subr.mxu0 0.0
    %315 = vmatpush1.msra.mxu0 0.0
    %316 = vmatprep.subr.mxu0 %v218
    %317 = vmatpush1.msra.mxu0 %v216
    %318 = vmatprep.subr.mxu0 %v214
    %319 = vmatpush1.msra.mxu0 %v212
    %320 = vmatprep.subr.mxu0 %v210
    %321 = vmatpush1.msra.mxu0 %v208
    %322 = vmatprep.subr.mxu0 %v206
    %323 = vmatpush1.msra.mxu0 %v204
    %324 = vmatprep.subr.mxu0 0.0
    %325 = vmatpush2.msra.mxu0 0.0
    %326 = vmatprep.subr.mxu0 0.0
    %327 = vmatpush2.msra.mxu0 0.0
    %328 = vmatprep.subr.mxu0 0.0
    %329 = vmatpush2.msra.mxu0 0.0
    %330 = vmatprep.subr.mxu0 0.0
    %331 = vmatpush2.msra.mxu0 0.0
    %332 = vmatprep.subr.mxu0 0.0
    %333 = vmatpush2.msra.mxu0 0.0
    %334 = vmatprep.subr.mxu0 0.0
    %335 = vmatpush2.msra.mxu0 0.0
    %336 = vmatprep.subr.mxu0 0.0
    %337 = vmatpush2.msra.mxu0 0.0
    %338 = vmatprep.subr.mxu0 0.0
    %339 = vmatpush2.msra.mxu0 0.0
    %340 = vmatprep.subr.mxu0 0.0
    %341 = vmatpush2.msra.mxu0 0.0
    %342 = vmatprep.subr.mxu0 0.0
    %343 = vmatpush2.msra.mxu0 0.0
    %344 = vmatprep.subr.mxu0 0.0
    %345 = vmatpush2.msra.mxu0 0.0
    %346 = vmatprep.subr.mxu0 0.0
    %347 = vmatpush2.msra.mxu0 0.0
    %348 = vmatprep.subr.mxu0 0.0
    %349 = vmatpush2.msra.mxu0 0.0
    %350 = vmatprep.subr.mxu0 0.0
    %351 = vmatpush2.msra.mxu0 0.0
    %352 = vmatprep.subr.mxu0 0.0
    %353 = vmatpush2.msra.mxu0 0.0
    %354 = vmatprep.subr.mxu0 0.0
    %355 = vmatpush2.msra.mxu0 0.0
    %356 = vmatprep.mubr.f32.mxu0 0.0
    %357 = vmatmul.mubr.f32.gmra.mxu0 %v269
    %v358 = vpop.f32.mrf.mxu0
    %v359 = vadd.f32 %v230, %v358
    %v360 = vpop.f32.mrf.mxu0
    %v361 = vadd.f32 %v230, %v360
    %362 = vmatprep.mubr.f32.mxu0 0.0
    %363 = vmatmul.mubr.f32.gmra.mxu0 %v272
    %v364 = vpop.f32.mrf.mxu0
    %v365 = vadd.f32 %v235, %v364
    %v366 = vpop.f32.mrf.mxu0
    %v367 = vadd.f32 %v235, %v366
    %368 = vmatprep.mubr.f32.mxu0 0.0
    %369 = vmatmul.mubr.f32.gmra.mxu0 %v275
    %v370 = vpop.f32.mrf.mxu0
    %v371 = vadd.f32 %v240, %v370
    %v372 = vpop.f32.mrf.mxu0
    %v373 = vadd.f32 %v240, %v372
    %374 = vmatprep.mubr.f32.mxu0 0.0
    %375 = vmatmul.mubr.f32.gmra.mxu0 %v278
    %v376 = vpop.f32.mrf.mxu0
    %v377 = vadd.f32 %v245, %v376
    %v378 = vpop.f32.mrf.mxu0
    %v379 = vadd.f32 %v245, %v378
    %380 = vmatprep.mubr.f32.mxu0 0.0
    %381 = vmatmul.mubr.f32.gmra.mxu0 %v281
    %v382 = vpop.f32.mrf.mxu0
    %v383 = vadd.f32 %v250, %v382
    %v384 = vpop.f32.mrf.mxu0
    %v385 = vadd.f32 %v250, %v384
    %386 = vmatprep.mubr.f32.mxu0 0.0
    %387 = vmatmul.mubr.f32.gmra.mxu0 %v284
    %v388 = vpop.f32.mrf.mxu0
    %v389 = vadd.f32 %v255, %v388
    %v390 = vpop.f32.mrf.mxu0
    %v391 = vadd.f32 %v255, %v390
    %392 = vmatprep.mubr.f32.mxu0 0.0
    %393 = vmatmul.mubr.f32.gmra.mxu0 %v287
    %v394 = vpop.f32.mrf.mxu0
    %v395 = vadd.f32 %v260, %v394
    %v396 = vpop.f32.mrf.mxu0
    %v397 = vadd.f32 %v260, %v396
    %398 = vmatprep.mubr.f32.mxu0 0.0
    %399 = vmatmul.mubr.f32.gmra.mxu0 %v290
    %v400 = vpop.f32.mrf.mxu0
    %v401 = vadd.f32 %v265, %v400
    %v402 = vpop.f32.mrf.mxu0
    %v403 = vadd.f32 %v265, %v402
    %404 = vdwg.mxu0
    %v405 = vtanh.pop %v359
    %v406 = vtanh.pop %v361
    %v407 = vtanh.pop %v365
    %v408 = vtanh.pop %v367
    %v409 = vtanh.pop %v371
    %v410 = vtanh.pop %v373
    %v411 = vtanh.pop %v377
    %v412 = vtanh.pop %v379
    %v413 = vtanh.pop %v383
    %v414 = vtanh.pop %v385
    %v415 = vtanh.pop %v389
    %v416 = vtanh.pop %v391
    %v417 = vtanh.pop %v395
    %v418 = vtanh.pop %v397
    %v419 = vtanh.pop %v401
    %v420 = vtanh.pop %v403
    %v421 = vld [vmem:[%s3] sm:$0xff]
    %v422 = vld [vmem:[%s3 + $0x8] sm:$0xff]
    %v423 = vld [vmem:[%s3 + $0x10] sm:$0xff]
    %v424 = vld [vmem:[%s3 + $0x18] sm:$0xff]
    %426 = vset.pattern.permute.xlu0 0
    %427 = vperm.xlu0 %426, %v36
    %v428 = vpop.permute.xlu0 %427
    %431 = vset.pattern.permute.xlu0 0
    %432 = vperm.xlu0 %431, %v37
    %v433 = vpop.permute.xlu0 %432
    %436 = vset.pattern.permute.xlu0 0
    %437 = vperm.xlu0 %436, %v38
    %v438 = vpop.permute.xlu0 %437
    %441 = vset.pattern.permute.xlu0 0
    %442 = vperm.xlu0 %441, %v39
    %v443 = vpop.permute.xlu0 %442
    %vm445 = vcmask 523264
    %v447 = vsel %vm445, %v421, 0
    %v450 = vsel %vm445, %v422, 0
    %v453 = vsel %vm445, %v423, 0
    %v456 = vsel %vm445, %v424, 0
    %458 = vmatprep.subr.mxu0 0.0
    %459 = vmatpush1.msra.mxu0 0.0
    %460 = vmatprep.subr.mxu0 0.0
    %461 = vmatpush1.msra.mxu0 0.0
    %462 = vmatprep.subr.mxu0 0.0
    %463 = vmatpush1.msra.mxu0 0.0
    %464 = vmatprep.subr.mxu0 0.0
    %465 = vmatpush1.msra.mxu0 0.0
    %466 = vmatprep.subr.mxu0 0.0
    %467 = vmatpush1.msra.mxu0 0.0
    %468 = vmatprep.subr.mxu0 0.0
    %469 = vmatpush1.msra.mxu0 0.0
    %470 = vmatprep.subr.mxu0 0.0
    %471 = vmatpush1.msra.mxu0 0.0
    %472 = vmatprep.subr.mxu0 0.0
    %473 = vmatpush1.msra.mxu0 0.0
    %474 = vmatprep.subr.mxu0 %v420
    %475 = vmatpush1.msra.mxu0 %v419
    %476 = vmatprep.subr.mxu0 %v418
    %477 = vmatpush1.msra.mxu0 %v417
    %478 = vmatprep.subr.mxu0 %v416
    %479 = vmatpush1.msra.mxu0 %v415
    %480 = vmatprep.subr.mxu0 %v414
    %481 = vmatpush1.msra.mxu0 %v413
    %482 = vmatprep.subr.mxu0 %v412
    %483 = vmatpush1.msra.mxu0 %v411
    %484 = vmatprep.subr.mxu0 %v410
    %485 = vmatpush1.msra.mxu0 %v409
    %486 = vmatprep.subr.mxu0 %v408
    %487 = vmatpush1.msra.mxu0 %v407
    %488 = vmatprep.subr.mxu0 %v406
    %489 = vmatpush1.msra.mxu0 %v405
    %490 = vmatprep.subr.mxu0 0.0
    %491 = vmatpush2.msra.mxu0 0.0
    %492 = vmatprep.subr.mxu0 0.0
    %493 = vmatpush2.msra.mxu0 0.0
    %494 = vmatprep.subr.mxu0 0.0
    %495 = vmatpush2.msra.mxu0 0.0
    %496 = vmatprep.subr.mxu0 0.0
    %497 = vmatpush2.msra.mxu0 0.0
    %498 = vmatprep.subr.mxu0 0.0
    %499 = vmatpush2.msra.mxu0 0.0
    %500 = vmatprep.subr.mxu0 0.0
    %501 = vmatpush2.msra.mxu0 0.0
    %502 = vmatprep.subr.mxu0 0.0
    %503 = vmatpush2.msra.mxu0 0.0
    %504 = vmatprep.subr.mxu0 0.0
    %505 = vmatpush2.msra.mxu0 0.0
    %506 = vmatprep.subr.mxu0 0.0
    %507 = vmatpush2.msra.mxu0 0.0
    %508 = vmatprep.subr.mxu0 0.0
    %509 = vmatpush2.msra.mxu0 0.0
    %510 = vmatprep.subr.mxu0 0.0
    %511 = vmatpush2.msra.mxu0 0.0
    %512 = vmatprep.subr.mxu0 0.0
    %513 = vmatpush2.msra.mxu0 0.0
    %514 = vmatprep.subr.mxu0 0.0
    %515 = vmatpush2.msra.mxu0 0.0
    %516 = vmatprep.subr.mxu0 0.0
    %517 = vmatpush2.msra.mxu0 0.0
    %518 = vmatprep.subr.mxu0 0.0
    %519 = vmatpush2.msra.mxu0 0.0
    %520 = vmatprep.subr.mxu0 0.0
    %521 = vmatpush2.msra.mxu0 0.0
    %522 = vmatprep.mubr.f32.mxu0 0.0
    %523 = vmatmul.mubr.f32.gmra.mxu0 %v447
    %v524 = vpop.f32.mrf.mxu0
    %v525 = vadd.f32 %v428, %v524
    %v526 = vpop.f32.mrf.mxu0
    %v527 = vadd.f32 %v428, %v526
    %528 = vmatprep.mubr.f32.mxu0 0.0
    %529 = vmatmul.mubr.f32.gmra.mxu0 %v450
    %v530 = vpop.f32.mrf.mxu0
    %v531 = vadd.f32 %v433, %v530
    %v532 = vpop.f32.mrf.mxu0
    %v533 = vadd.f32 %v433, %v532
    %534 = vmatprep.mubr.f32.mxu0 0.0
    %535 = vmatmul.mubr.f32.gmra.mxu0 %v453
    %v536 = vpop.f32.mrf.mxu0
    %v537 = vadd.f32 %v438, %v536
    %v538 = vpop.f32.mrf.mxu0
    %v539 = vadd.f32 %v438, %v538
    %540 = vmatprep.mubr.f32.mxu0 0.0
    %541 = vmatmul.mubr.f32.gmra.mxu0 %v456
    %v542 = vpop.f32.mrf.mxu0
    %v543 = vadd.f32 %v443, %v542
    %v544 = vpop.f32.mrf.mxu0
    %v545 = vadd.f32 %v443, %v544
    %546 = vdwg.mxu0
    %v547 = vxor.u32 %v525, 2147483648
    %v548 = vxor.u32 %v527, 2147483648
    %v549 = vxor.u32 %v531, 2147483648
    %v550 = vxor.u32 %v533, 2147483648
    %v551 = vxor.u32 %v537, 2147483648
    %v552 = vxor.u32 %v539, 2147483648
    %v553 = vxor.u32 %v543, 2147483648
    %v554 = vxor.u32 %v545, 2147483648
    %v555 = vmul.f32 %v547, 1.442695
    %v556 = vpow.pop %v555
    %v557 = vmul.f32 %v548, 1.442695
    %v558 = vpow.pop %v557
    %v559 = vmul.f32 %v549, 1.442695
    %v560 = vpow.pop %v559
    %v561 = vmul.f32 %v550, 1.442695
    %v562 = vpow.pop %v561
    %v563 = vmul.f32 %v551, 1.442695
    %v564 = vpow.pop %v563
    %v565 = vmul.f32 %v552, 1.442695
    %v566 = vpow.pop %v565
    %v567 = vmul.f32 %v553, 1.442695
    %v568 = vpow.pop %v567
    %v569 = vmul.f32 %v554, 1.442695
    %v570 = vpow.pop %v569
    %v571 = vadd.f32 %v556, 1.0
    %v572 = vadd.f32 %v558, 1.0
    %v573 = vadd.f32 %v560, 1.0
    %v574 = vadd.f32 %v562, 1.0
    %v575 = vadd.f32 %v564, 1.0
    %v576 = vadd.f32 %v566, 1.0
    %v577 = vadd.f32 %v568, 1.0
    %v578 = vadd.f32 %v570, 1.0
    %v579 = vrcp.pop %v571
    %v580 = vmul.f32 1.0, %v579
    %v581 = vrcp.pop %v572
    %v582 = vmul.f32 1.0, %v581
    %v583 = vrcp.pop %v573
    %v584 = vmul.f32 1.0, %v583
    %v585 = vrcp.pop %v574
    %v586 = vmul.f32 1.0, %v585
    %v587 = vrcp.pop %v575
    %v588 = vmul.f32 1.0, %v587
    %v589 = vrcp.pop %v576
    %v590 = vmul.f32 1.0, %v589
    %v591 = vrcp.pop %v577
    %v592 = vmul.f32 1.0, %v591
    %v593 = vrcp.pop %v578
    %v594 = vmul.f32 1.0, %v593
    %v595 = vld [vmem:[%s4] sm:$0xff]
    %597 = vset.pattern.permute.xlu0 0
    %598 = vperm.xlu0 %597, %v40
    %v599 = vpop.permute.xlu0 %598
    %v602 = vsel %vm267, %v595, 0
    %604 = vmatprep.subr.mxu0 0.0
    %605 = vmatpush1.msra.mxu0 0.0
    %606 = vmatprep.subr.mxu0 0.0
    %607 = vmatpush1.msra.mxu0 0.0
    %608 = vmatprep.subr.mxu0 0.0
    %609 = vmatpush1.msra.mxu0 0.0
    %610 = vmatprep.subr.mxu0 0.0
    %611 = vmatpush1.msra.mxu0 0.0
    %612 = vmatprep.subr.mxu0 0.0
    %613 = vmatpush1.msra.mxu0 0.0
    %614 = vmatprep.subr.mxu0 0.0
    %615 = vmatpush1.msra.mxu0 0.0
    %616 = vmatprep.subr.mxu0 0.0
    %617 = vmatpush1.msra.mxu0 0.0
    %618 = vmatprep.subr.mxu0 0.0
    %619 = vmatpush1.msra.mxu0 0.0
    %620 = vmatprep.subr.mxu0 0.0
    %621 = vmatpush1.msra.mxu0 0.0
    %622 = vmatprep.subr.mxu0 0.0
    %623 = vmatpush1.msra.mxu0 0.0
    %624 = vmatprep.subr.mxu0 0.0
    %625 = vmatpush1.msra.mxu0 0.0
    %626 = vmatprep.subr.mxu0 0.0
    %627 = vmatpush1.msra.mxu0 0.0
    %628 = vmatprep.subr.mxu0 %v594
    %629 = vmatpush1.msra.mxu0 %v592
    %630 = vmatprep.subr.mxu0 %v590
    %631 = vmatpush1.msra.mxu0 %v588
    %632 = vmatprep.subr.mxu0 %v586
    %633 = vmatpush1.msra.mxu0 %v584
    %634 = vmatprep.subr.mxu0 %v582
    %635 = vmatpush1.msra.mxu0 %v580
    %636 = vmatprep.subr.mxu0 0.0
    %637 = vmatpush2.msra.mxu0 0.0
    %638 = vmatprep.subr.mxu0 0.0
    %639 = vmatpush2.msra.mxu0 0.0
    %640 = vmatprep.subr.mxu0 0.0
    %641 = vmatpush2.msra.mxu0 0.0
    %642 = vmatprep.subr.mxu0 0.0
    %643 = vmatpush2.msra.mxu0 0.0
    %644 = vmatprep.subr.mxu0 0.0
    %645 = vmatpush2.msra.mxu0 0.0
    %646 = vmatprep.subr.mxu0 0.0
    %647 = vmatpush2.msra.mxu0 0.0
    %648 = vmatprep.subr.mxu0 0.0
    %649 = vmatpush2.msra.mxu0 0.0
    %650 = vmatprep.subr.mxu0 0.0
    %651 = vmatpush2.msra.mxu0 0.0
    %652 = vmatprep.subr.mxu0 0.0
    %653 = vmatpush2.msra.mxu0 0.0
    %654 = vmatprep.subr.mxu0 0.0
    %655 = vmatpush2.msra.mxu0 0.0
    %656 = vmatprep.subr.mxu0 0.0
    %657 = vmatpush2.msra.mxu0 0.0
    %658 = vmatprep.subr.mxu0 0.0
    %659 = vmatpush2.msra.mxu0 0.0
    %660 = vmatprep.subr.mxu0 0.0
    %661 = vmatpush2.msra.mxu0 0.0
    %662 = vmatprep.subr.mxu0 0.0
    %663 = vmatpush2.msra.mxu0 0.0
    %664 = vmatprep.subr.mxu0 0.0
    %665 = vmatpush2.msra.mxu0 0.0
    %666 = vmatprep.subr.mxu0 0.0
    %667 = vmatpush2.msra.mxu0 0.0
    %668 = vmatprep.mubr.f32.mxu0 0.0
    %669 = vmatmul.mubr.f32.gmra.mxu0 %v602
    %v670 = vpop.f32.mrf.mxu0
    %v671 = vadd.f32 %v599, %v670
    %v672 = vpop.f32.mrf.mxu0
    %v673 = vadd.f32 %v599, %v672
    %674 = vdwg.mxu0
    %675 = vst [vmem:[#allocation2] sm:$0xff] %v671
    %676 = vst [vmem:[#allocation2 + $0x8] sm:$0xff] %v673
    // Predicated region
    $region26: #{_mlp_forward_impl.1} parent=1 // pred_check
      _
    $region27: #{_mlp_forward_impl.1} parent=1 // pred_check_branch
      %678 = sbr.rel (0) target = $region29
    $region28: #{_mlp_forward_impl.1} parent=1 // pred_region
      %s680 = ssub.s32 256, 256
      %681 = vsyncadd [#allocation3], %s680
      %s683 = sshll.u32 [#allocation2], 4
      %s684 = int_to_ptr.vmem [resolvable:$true] %s683
      %686 = dma.vmem_to_hbm [thread:$0]  %s684, 256, %s6, [#allocation3]
    $region29: #{_mlp_forward_impl.1} parent=1 // pred_fallthru
      _
    // Predicated region
    $region30: #{_mlp_forward_impl.1} parent=1 // pred_check
      _
    $region31: #{_mlp_forward_impl.1} parent=1 // pred_check_branch
      %688 = sbr.rel (0) target = $region33
    $region32: #{_mlp_forward_impl.1} parent=1 // pred_region
      %689 = dma.done [#allocation3], 256
    $region33: #{_mlp_forward_impl.1} parent=1 // pred_fallthru
      _
    %690 = vsyncpa [#allocation3], 1

</llo_original>
